<compile_context>
chip_gen: v7x
topology: tpu7x:2x2x1
jax: 0.10.0
libtpu: 0.0.40
codegen_flags: <defaults>
</compile_context>

<pallas_src>
import numpy as np

import jax
import jax.numpy as jnp
from jax.experimental import pallas as pl
from jax.experimental.pallas import tpu as pltpu

_EPS = 1e-8          # unit_projection: X / (|X| + eps)
_NEG_SLOPE = 0.01    # nn.LeakyReLU default negative_slope


def _make_kernel(block_b, seq, dims, compute_dtype, eps, approx_recip):
    """Kernel factory.  `compute_dtype` is the MXU operand dtype for the MLP
    matmuls; accumulation and all spectral / cumsum math stay in f32."""
    S, D = seq, dims
    H = 4 * D
    M = block_b * S

    def kernel(x_ref, w1_ref, b1_ref,
               w2q_ref, b2q_ref, w2k_ref, b2k_ref, w2v_ref, b2v_ref,
               inv_ref, tril_ref, o_ref):
        x = x_ref[...].astype(jnp.float32)             # (M, D), rows = (b, s)

        # ---- fused q|k|v MLP layer 1: one (M, D) @ (D, 12D) matmul ----------
        h = jnp.dot(x.astype(compute_dtype), w1_ref[...],
                    preferred_element_type=jnp.float32) + b1_ref[...]
        h = jnp.maximum(h, _NEG_SLOPE * h)             # LeakyReLU
        hm = h.astype(compute_dtype)

        # ---- layer 2 with the forward DFT folded in: (M, H) @ (H, 2D) gives
        #      each head's packed [re | im] spectrum directly -----------------
        def head_spec(w_ref, b_ref, lo):
            return jnp.dot(hm[:, lo:lo + H], w_ref[...],
                           preferred_element_type=jnp.float32) + b_ref[...]

        q_spec = head_spec(w2q_ref, b2q_ref, 0)        # (M, 2D)
        k_spec = head_spec(w2k_ref, b2k_ref, H)
        v_spec = head_spec(w2v_ref, b2v_ref, 2 * H)

        # unit_projection in the Fourier domain: X / (|X| + eps) per bin.
        # (real input => conjugate-symmetric spectrum, so this is exact)
        def unit(spec):
            re, im = spec[:, :D], spec[:, D:]
            inv_mag = pl.reciprocal(jnp.sqrt(re * re + im * im) + eps,
                                    approx=approx_recip)
            return re * inv_mag, im * inv_mag

        qre, qim = unit(q_spec)
        kre, kim = unit(k_spec)
        vre, vim = unit(v_spec)

        # hrr.bind(keys, values): elementwise complex product of spectra
        xkre = kre * vre - kim * vim
        xkim = kre * vim + kim * vre

        # Causal cumsum over the sequence axis (linear => commutes with the
        # DFT), applied per batch element with an (S, S) tril batched matmul
        # in f32 (keeps the prefix sums exact even in the bf16 path).
        # TODO(synk): for long S replace with a seq-chunked prefix sum (seq
        # tile grid axis marked "arbitrary" + a (block_b, 2D) running carry).
        xk3 = jnp.concatenate([xkre, xkim], axis=1).reshape(block_b, S, 2 * D)
        tril_b = jnp.broadcast_to(tril_ref[...], (block_b, S, S))
        s3 = jnp.einsum("bts,bsd->btd", tril_b, xk3,
                        preferred_element_type=jnp.float32)
        s2 = s3.reshape(M, 2 * D)
        sre, sim = s2[:, :D], s2[:, D:]

        # hrr.unbind(s, query) = ifft(S * conj(Q))   (|Q| == 1 after projection)
        ore = sre * qre + sim * qim
        oim = sim * qre - sre * qim

        # single inverse DFT: (M, 2D) @ (2D, D) in f32; 1/D folded into inv_ref
        mixed = jnp.dot(jnp.concatenate([ore, oim], axis=1), inv_ref[...],
                        preferred_element_type=jnp.float32)

        # HoloformerEncoderLayer.forward: x = x + mixer(x)
        y = (x + mixed).astype(o_ref.dtype)            # (M, D)

        # Lane-dense store: relayout (M, D) -> (block_b, S*D) using only a
        # leading-dim reshape, static middle-axis slices and one lane concat
        # (all guaranteed to lower), so the output block stores wide slabs
        # instead of D=32-lane masked partial stores.
        y3 = y.reshape(block_b, S, D)
        o_ref[...] = jnp.concatenate([y3[:, s, :] for s in range(S)], axis=1)

    return kernel


def _pick_block_b(batch, min_grid_steps=1):
    """Rows-per-grid-step (in batch elements).

    Single-TC chips (v5e/v6e): one big block (min_grid_steps=1) amortizes the
    per-step overhead and fills the MXU M dimension.  On v7x pass
    min_grid_steps=2 so both TensorCores get a "parallel" step.  Candidates
    must divide `batch` and keep the lane-dense (block_b, S*D) blocks legal
    (block_b % 8 == 0 or block_b == batch)."""
    cands = [c for c in range(1, batch + 1)
             if batch % c == 0 and (c == batch or c % 8 == 0)]
    ok = [c for c in cands if batch // c >= min_grid_steps]
    return max(ok) if ok else max(cands)


def init_params(key, dims):
    """Deterministic nn.Linear-style init (U(-1/sqrt(fan_in), 1/sqrt(fan_in)))."""
    params = {}
    for name in ("q", "k", "v"):
        key, k1, k2, k3, k4 = jax.random.split(key, 5)
        lim1 = 1.0 / np.sqrt(dims)
        lim2 = 1.0 / np.sqrt(4 * dims)
        w1 = jax.random.uniform(k1, (dims, 4 * dims), jnp.float32, -lim1, lim1)
        b1 = jax.random.uniform(k2, (4 * dims,), jnp.float32, -lim1, lim1)
        w2 = jax.random.uniform(k3, (4 * dims, dims), jnp.float32, -lim2, lim2)
        b2 = jax.random.uniform(k4, (dims,), jnp.float32, -lim2, lim2)
        params[name] = (w1, b1, w2, b2)
    return params


def holoformer_encoder_layer(x, params, *, block_b=None, min_grid_steps=1,
                             matmul_dtype=jnp.bfloat16, eps=_EPS):
    """x: (batch, seq, dims).

    matmul_dtype: MXU operand dtype for the MLP matmuls (bf16 is native on
    v5e/v6e/v7x and the default; accumulation, spectral math, cumsum and the
    inverse DFT stay f32).  Pass jnp.float32 for reference-level accuracy.
    min_grid_steps: 1 on single-TensorCore v5e/v6e; >=2 on v7x (2 TCs)."""
    B, S, D = x.shape
    H = 4 * D
    if block_b is None:
        block_b = _pick_block_b(B, min_grid_steps)
    assert B % block_b == 0, "batch must be divisible by block_b"
    assert block_b == B or block_b % 8 == 0, (
        "block_b must equal batch or be a multiple of 8 (lane-dense out tile)")
    M = block_b * S
    n_blocks = B // block_b

    # Real-DFT matrices (built in f64 host-side).  `fwd` is folded into the
    # layer-2 weights below; `inv` computes ifft(.).real with the 1/D folded
    # in, and is kept f32 in-kernel for accuracy.
    n = np.arange(D, dtype=np.float64)
    ang = 2.0 * np.pi * np.outer(n, n) / D
    cos_m, sin_m = np.cos(ang), np.sin(ang)
    fwd = np.concatenate([cos_m, -sin_m], axis=1)        # (D, 2D):  v @ fwd = [re | im]
    inv = np.concatenate([cos_m, -sin_m], axis=0) / D    # (2D, D): [re|im] @ inv = ifft(.).real

    # Per-batch causal prefix-sum operator (tril including the diagonal).
    tril = np.tril(np.ones((S, S), dtype=np.float64))

    wq1, bq1, wq2, bq2 = params["q"]
    wk1, bk1, wk2, bk2 = params["k"]
    wv1, bv1, wv2, bv2 = params["v"]

    md = matmul_dtype

    def fold_w2(w2):   # (H, D) -> (H, 2D): layer-2 weight followed by the DFT
        return jnp.asarray(np.asarray(w2, np.float64) @ fwd).astype(md)

    def fold_b2(b2):   # (D,) -> (1, 2D): layer-2 bias pushed through the DFT
        return jnp.asarray(np.asarray(b2, np.float64) @ fwd,
                           dtype=jnp.float32).reshape(1, 2 * D)

    consts = [
        jnp.concatenate([wq1, wk1, wv1], axis=1).astype(md),                # (D, 12D)
        jnp.concatenate([bq1, bk1, bv1]).reshape(1, 3 * H).astype(jnp.float32),
        fold_w2(wq2), fold_b2(bq2),
        fold_w2(wk2), fold_b2(bk2),
        fold_w2(wv2), fold_b2(bv2),
        jnp.asarray(inv, jnp.float32),                                      # (2D, D)
        jnp.asarray(tril, jnp.float32),                                     # (S, S)
    ]

    # Input rows flattened to (batch*seq, D) (cheap masked loads); the output
    # is presented lane-dense as (batch, seq*D) so each block stores wide
    # slabs instead of D=32-lane masked stores.
    x2d = x.reshape(B * S, D)

    def const_spec(a):
        # Grid-invariant input (constant index_map => no re-DMA across steps).
        # At model scale, pipeline_mode=pl.Buffered(1) would single-buffer
        # these weights and halve their VMEM footprint (irrelevant here).
        return pl.BlockSpec(a.shape, lambda i: (0,) * a.ndim)

    out2d = pl.pallas_call(
        _make_kernel(block_b, S, D, md, eps,
                     approx_recip=(md != jnp.float32)),
        out_shape=jax.ShapeDtypeStruct((B, S * D), x.dtype),
        grid=(n_blocks,),
        in_specs=[pl.BlockSpec((M, D), lambda i: (i, 0))]
                 + [const_spec(a) for a in consts],
        out_specs=pl.BlockSpec((block_b, S * D), lambda i: (i, 0)),
        compiler_params=pltpu.CompilerParams(
            dimension_semantics=("parallel",),
            vmem_limit_bytes=48 * 1024 * 1024),
    )(x2d, *consts)
    return out2d.reshape(B, S, D)


def _reference(x, params, eps=_EPS):
    """Pure-JAX FFT reference of the PyTorch forward pass (for validation)."""
    hp = jax.lax.Precision.HIGHEST

    def mlp(p):
        w1, b1, w2, b2 = p
        h = jnp.dot(x, w1, precision=hp) + b1
        h = jnp.where(h > 0, h, _NEG_SLOPE * h)
        return jnp.dot(h, w2, precision=hp) + b2

    def unit_proj(v):
        f = jnp.fft.fft(v, axis=-1)
        return jnp.fft.ifft(f / (jnp.abs(f) + eps), axis=-1).real

    q = unit_proj(mlp(params["q"]))
    k = unit_proj(mlp(params["k"]))
    v = unit_proj(mlp(params["v"]))
    xk = jnp.fft.ifft(jnp.fft.fft(k, axis=-1) * jnp.fft.fft(v, axis=-1), axis=-1).real
    s = jnp.cumsum(xk, axis=1)
    mixed = jnp.fft.ifft(jnp.fft.fft(s, axis=-1)
                         * jnp.conj(jnp.fft.fft(q, axis=-1)), axis=-1).real
    return x + mixed


if __name__ == "__main__":
    B, S, D = 2, 8, 32   # batch, sequence, embedding dims (dropout unused in forward)
    key = jax.random.PRNGKey(0)
    kx, kp = jax.random.split(key)
    x = jax.random.normal(kx, (B, S, D), jnp.float32)
    params = init_params(kp, D)

    ref = jax.block_until_ready(_reference(x, params))

    # Accuracy-oriented f32 path (validates the restructured pipeline).
    out32 = jax.block_until_ready(
        holoformer_encoder_layer(x, params, matmul_dtype=jnp.float32))
    assert out32.shape == (B, S, D), out32.shape
    assert bool(jnp.all(jnp.isfinite(out32))), "non-finite output (f32 path)"
    err32 = float(jnp.max(jnp.abs(out32 - ref)))
    # tolerance covers MXU f32 multi-pass rounding vs the XLA FFT reference
    assert err32 < 3e-2, f"f32 path mismatch vs FFT reference: {err32}"

    # Default fast path: bf16 MXU operands, f32 accumulation / spectral math.
    out16 = jax.block_until_ready(holoformer_encoder_layer(x, params))
    assert out16.shape == (B, S, D), out16.shape
    assert bool(jnp.all(jnp.isfinite(out16))), "non-finite output (bf16 path)"
    err16 = float(jnp.max(jnp.abs(out16 - ref)))
    assert err16 < 2.5e-1, f"bf16 path mismatch vs FFT reference: {err16}"

    print("KERNEL_OK")
</pallas_src>

<mosaic_0001>
module attributes {stable_mosaic.version = 11 : i64} {
  func.func @kernel(%arg0: i32, %arg1: memref<16x32xf32, #tpu.memory_space<vmem>>, %arg2: memref<32x384xf32, #tpu.memory_space<vmem>>, %arg3: memref<1x384xf32, #tpu.memory_space<vmem>>, %arg4: memref<128x64xf32, #tpu.memory_space<vmem>>, %arg5: memref<1x64xf32, #tpu.memory_space<vmem>>, %arg6: memref<128x64xf32, #tpu.memory_space<vmem>>, %arg7: memref<1x64xf32, #tpu.memory_space<vmem>>, %arg8: memref<128x64xf32, #tpu.memory_space<vmem>>, %arg9: memref<1x64xf32, #tpu.memory_space<vmem>>, %arg10: memref<64x32xf32, #tpu.memory_space<vmem>>, %arg11: memref<8x8xf32, #tpu.memory_space<vmem>>, %arg12: memref<2x256xf32, #tpu.memory_space<vmem>>) attributes {dimension_semantics = [#tpu.dimension_semantics<parallel>], iteration_bounds = array<i64: 1>, scalar_prefetch = 0 : i64, scratch_operands = 0 : i64, tpu.core_type = #tpu.core_type<tc>, window_params = [{transform_indices = @transform_0, window_bounds = array<i64: 16, 32>}, {pipeline_mode = #tpu.pipeline_mode<synchronous>, transform_indices = @transform_1, window_bounds = array<i64: 32, 384>}, {pipeline_mode = #tpu.pipeline_mode<synchronous>, transform_indices = @transform_2, window_bounds = array<i64: 1, 384>}, {pipeline_mode = #tpu.pipeline_mode<synchronous>, transform_indices = @transform_3, window_bounds = array<i64: 128, 64>}, {pipeline_mode = #tpu.pipeline_mode<synchronous>, transform_indices = @transform_4, window_bounds = array<i64: 1, 64>}, {pipeline_mode = #tpu.pipeline_mode<synchronous>, transform_indices = @transform_5, window_bounds = array<i64: 128, 64>}, {pipeline_mode = #tpu.pipeline_mode<synchronous>, transform_indices = @transform_6, window_bounds = array<i64: 1, 64>}, {pipeline_mode = #tpu.pipeline_mode<synchronous>, transform_indices = @transform_7, window_bounds = array<i64: 128, 64>}, {pipeline_mode = #tpu.pipeline_mode<synchronous>, transform_indices = @transform_8, window_bounds = array<i64: 1, 64>}, {pipeline_mode = #tpu.pipeline_mode<synchronous>, transform_indices = @transform_9, window_bounds = array<i64: 64, 32>}, {pipeline_mode = #tpu.pipeline_mode<synchronous>, transform_indices = @transform_10, window_bounds = array<i64: 8, 8>}, {transform_indices = @transform_11, window_bounds = array<i64: 2, 256>}]} {
    %c0 = arith.constant 0 : index
    %c0_0 = arith.constant 0 : index
    %0 = vector.load %arg1[%c0, %c0_0] : memref<16x32xf32, #tpu.memory_space<vmem>>, vector<16x32xf32>
    %c0_1 = arith.constant 0 : index
    %c0_2 = arith.constant 0 : index
    %1 = vector.load %arg2[%c0_1, %c0_2] : memref<32x384xf32, #tpu.memory_space<vmem>>, vector<32x384xf32>
    %cst = arith.constant dense<0.000000e+00> : vector<16x384xf32>
    %2 = tpu.matmul %0, %1, %cst {dimension_numbers = #tpu.dot_dimension_numbers<[1], [0], [0], [1], [0, 0, 1, 1], [], []>} : vector<16x32xf32>, vector<32x384xf32>, vector<16x384xf32> -> vector<16x384xf32>
    %c0_3 = arith.constant 0 : index
    %c0_4 = arith.constant 0 : index
    %3 = vector.load %arg3[%c0_3, %c0_4] : memref<1x384xf32, #tpu.memory_space<vmem>>, vector<1x384xf32>
    %4 = vector.broadcast %3 : vector<1x384xf32> to vector<16x384xf32>
    %5 = arith.addf %2, %4 : vector<16x384xf32>
    %cst_5 = arith.constant 0.00999999977 : f32
    %6 = vector.broadcast %cst_5 : f32 to vector<16x384xf32>
    %7 = arith.mulf %6, %5 : vector<16x384xf32>
    %8 = arith.maximumf %5, %7 : vector<16x384xf32>
    %9 = vector.extract_strided_slice %8 {offsets = [0, 0], sizes = [16, 128], strides = [1, 1]} : vector<16x384xf32> to vector<16x128xf32>
    %c0_6 = arith.constant 0 : index
    %c0_7 = arith.constant 0 : index
    %10 = vector.load %arg4[%c0_6, %c0_7] : memref<128x64xf32, #tpu.memory_space<vmem>>, vector<128x64xf32>
    %cst_8 = arith.constant dense<0.000000e+00> : vector<16x64xf32>
    %11 = tpu.matmul %9, %10, %cst_8 {dimension_numbers = #tpu.dot_dimension_numbers<[1], [0], [0], [1], [0, 0, 1, 1], [], []>} : vector<16x128xf32>, vector<128x64xf32>, vector<16x64xf32> -> vector<16x64xf32>
    %c0_9 = arith.constant 0 : index
    %c0_10 = arith.constant 0 : index
    %12 = vector.load %arg5[%c0_9, %c0_10] : memref<1x64xf32, #tpu.memory_space<vmem>>, vector<1x64xf32>
    %13 = vector.broadcast %12 : vector<1x64xf32> to vector<16x64xf32>
    %14 = arith.addf %11, %13 : vector<16x64xf32>
    %15 = vector.extract_strided_slice %8 {offsets = [0, 128], sizes = [16, 128], strides = [1, 1]} : vector<16x384xf32> to vector<16x128xf32>
    %c0_11 = arith.constant 0 : index
    %c0_12 = arith.constant 0 : index
    %16 = vector.load %arg6[%c0_11, %c0_12] : memref<128x64xf32, #tpu.memory_space<vmem>>, vector<128x64xf32>
    %cst_13 = arith.constant dense<0.000000e+00> : vector<16x64xf32>
    %17 = tpu.matmul %15, %16, %cst_13 {dimension_numbers = #tpu.dot_dimension_numbers<[1], [0], [0], [1], [0, 0, 1, 1], [], []>} : vector<16x128xf32>, vector<128x64xf32>, vector<16x64xf32> -> vector<16x64xf32>
    %c0_14 = arith.constant 0 : index
    %c0_15 = arith.constant 0 : index
    %18 = vector.load %arg7[%c0_14, %c0_15] : memref<1x64xf32, #tpu.memory_space<vmem>>, vector<1x64xf32>
    %19 = vector.broadcast %18 : vector<1x64xf32> to vector<16x64xf32>
    %20 = arith.addf %17, %19 : vector<16x64xf32>
    %21 = vector.extract_strided_slice %8 {offsets = [0, 256], sizes = [16, 128], strides = [1, 1]} : vector<16x384xf32> to vector<16x128xf32>
    %c0_16 = arith.constant 0 : index
    %c0_17 = arith.constant 0 : index
    %22 = vector.load %arg8[%c0_16, %c0_17] : memref<128x64xf32, #tpu.memory_space<vmem>>, vector<128x64xf32>
    %cst_18 = arith.constant dense<0.000000e+00> : vector<16x64xf32>
    %23 = tpu.matmul %21, %22, %cst_18 {dimension_numbers = #tpu.dot_dimension_numbers<[1], [0], [0], [1], [0, 0, 1, 1], [], []>} : vector<16x128xf32>, vector<128x64xf32>, vector<16x64xf32> -> vector<16x64xf32>
    %c0_19 = arith.constant 0 : index
    %c0_20 = arith.constant 0 : index
    %24 = vector.load %arg9[%c0_19, %c0_20] : memref<1x64xf32, #tpu.memory_space<vmem>>, vector<1x64xf32>
    %25 = vector.broadcast %24 : vector<1x64xf32> to vector<16x64xf32>
    %26 = arith.addf %23, %25 : vector<16x64xf32>
    %27 = vector.extract_strided_slice %14 {offsets = [0, 0], sizes = [16, 32], strides = [1, 1]} : vector<16x64xf32> to vector<16x32xf32>
    %28 = vector.extract_strided_slice %14 {offsets = [0, 32], sizes = [16, 32], strides = [1, 1]} : vector<16x64xf32> to vector<16x32xf32>
    %29 = arith.mulf %27, %27 : vector<16x32xf32>
    %30 = arith.mulf %28, %28 : vector<16x32xf32>
    %31 = arith.addf %29, %30 : vector<16x32xf32>
    %32 = math.sqrt %31 : vector<16x32xf32>
    %cst_21 = arith.constant 9.99999993E-9 : f32
    %33 = vector.broadcast %cst_21 : f32 to vector<16x32xf32>
    %34 = arith.addf %32, %33 : vector<16x32xf32>
    %35 = tpu.reciprocal %34 : vector<16x32xf32> -> vector<16x32xf32>
    %36 = arith.mulf %27, %35 : vector<16x32xf32>
    %37 = arith.mulf %28, %35 : vector<16x32xf32>
    %38 = vector.extract_strided_slice %20 {offsets = [0, 0], sizes = [16, 32], strides = [1, 1]} : vector<16x64xf32> to vector<16x32xf32>
    %39 = vector.extract_strided_slice %20 {offsets = [0, 32], sizes = [16, 32], strides = [1, 1]} : vector<16x64xf32> to vector<16x32xf32>
    %40 = arith.mulf %38, %38 : vector<16x32xf32>
    %41 = arith.mulf %39, %39 : vector<16x32xf32>
    %42 = arith.addf %40, %41 : vector<16x32xf32>
    %43 = math.sqrt %42 : vector<16x32xf32>
    %cst_22 = arith.constant 9.99999993E-9 : f32
    %44 = vector.broadcast %cst_22 : f32 to vector<16x32xf32>
    %45 = arith.addf %43, %44 : vector<16x32xf32>
    %46 = tpu.reciprocal %45 : vector<16x32xf32> -> vector<16x32xf32>
    %47 = arith.mulf %38, %46 : vector<16x32xf32>
    %48 = arith.mulf %39, %46 : vector<16x32xf32>
    %49 = vector.extract_strided_slice %26 {offsets = [0, 0], sizes = [16, 32], strides = [1, 1]} : vector<16x64xf32> to vector<16x32xf32>
    %50 = vector.extract_strided_slice %26 {offsets = [0, 32], sizes = [16, 32], strides = [1, 1]} : vector<16x64xf32> to vector<16x32xf32>
    %51 = arith.mulf %49, %49 : vector<16x32xf32>
    %52 = arith.mulf %50, %50 : vector<16x32xf32>
    %53 = arith.addf %51, %52 : vector<16x32xf32>
    %54 = math.sqrt %53 : vector<16x32xf32>
    %cst_23 = arith.constant 9.99999993E-9 : f32
    %55 = vector.broadcast %cst_23 : f32 to vector<16x32xf32>
    %56 = arith.addf %54, %55 : vector<16x32xf32>
    %57 = tpu.reciprocal %56 : vector<16x32xf32> -> vector<16x32xf32>
    %58 = arith.mulf %49, %57 : vector<16x32xf32>
    %59 = arith.mulf %50, %57 : vector<16x32xf32>
    %60 = arith.mulf %47, %58 : vector<16x32xf32>
    %61 = arith.mulf %48, %59 : vector<16x32xf32>
    %62 = arith.subf %60, %61 : vector<16x32xf32>
    %63 = arith.mulf %47, %59 : vector<16x32xf32>
    %64 = arith.mulf %48, %58 : vector<16x32xf32>
    %65 = arith.addf %63, %64 : vector<16x32xf32>
    %66 = tpu.concatenate %62, %65 in 1 : vector<16x32xf32>, vector<16x32xf32> -> vector<16x64xf32>
    %67 = vector.shape_cast %66 : vector<16x64xf32> to vector<2x8x64xf32>
    %c0_24 = arith.constant 0 : index
    %c0_25 = arith.constant 0 : index
    %68 = vector.load %arg11[%c0_24, %c0_25] : memref<8x8xf32, #tpu.memory_space<vmem>>, vector<8x8xf32>
    %69 = vector.shape_cast %68 : vector<8x8xf32> to vector<1x8x8xf32>
    %70 = vector.broadcast %69 : vector<1x8x8xf32> to vector<2x8x8xf32>
    "tpu.trace_start"() <{level = 10 : i32, message = "bts,bsd->btd"}> : () -> ()
    %cst_26 = arith.constant dense<0.000000e+00> : vector<2x8x64xf32>
    %71 = tpu.matmul %70, %67, %cst_26 {dimension_numbers = #tpu.dot_dimension_numbers<[2], [1], [1], [2], [0, 0, 0, 1, 1, 2], [0], [0]>} : vector<2x8x8xf32>, vector<2x8x64xf32>, vector<2x8x64xf32> -> vector<2x8x64xf32>
    "tpu.trace_stop"() : () -> ()
    %72 = vector.shape_cast %71 : vector<2x8x64xf32> to vector<16x64xf32>
    %73 = vector.extract_strided_slice %72 {offsets = [0, 0], sizes = [16, 32], strides = [1, 1]} : vector<16x64xf32> to vector<16x32xf32>
    %74 = vector.extract_strided_slice %72 {offsets = [0, 32], sizes = [16, 32], strides = [1, 1]} : vector<16x64xf32> to vector<16x32xf32>
    %75 = arith.mulf %73, %36 : vector<16x32xf32>
    %76 = arith.mulf %74, %37 : vector<16x32xf32>
    %77 = arith.addf %75, %76 : vector<16x32xf32>
    %78 = arith.mulf %74, %36 : vector<16x32xf32>
    %79 = arith.mulf %73, %37 : vector<16x32xf32>
    %80 = arith.subf %78, %79 : vector<16x32xf32>
    %81 = tpu.concatenate %77, %80 in 1 : vector<16x32xf32>, vector<16x32xf32> -> vector<16x64xf32>
    %c0_27 = arith.constant 0 : index
    %c0_28 = arith.constant 0 : index
    %82 = vector.load %arg10[%c0_27, %c0_28] : memref<64x32xf32, #tpu.memory_space<vmem>>, vector<64x32xf32>
    %cst_29 = arith.constant dense<0.000000e+00> : vector<16x32xf32>
    %83 = tpu.matmul %81, %82, %cst_29 {dimension_numbers = #tpu.dot_dimension_numbers<[1], [0], [0], [1], [0, 0, 1, 1], [], []>} : vector<16x64xf32>, vector<64x32xf32>, vector<16x32xf32> -> vector<16x32xf32>
    %84 = arith.addf %0, %83 : vector<16x32xf32>
    %85 = vector.shape_cast %84 : vector<16x32xf32> to vector<2x8x32xf32>
    %86 = vector.extract_strided_slice %85 {offsets = [0, 0, 0], sizes = [2, 1, 32], strides = [1, 1, 1]} : vector<2x8x32xf32> to vector<2x1x32xf32>
    %87 = vector.shape_cast %86 : vector<2x1x32xf32> to vector<2x32xf32>
    %88 = vector.extract_strided_slice %85 {offsets = [0, 1, 0], sizes = [2, 1, 32], strides = [1, 1, 1]} : vector<2x8x32xf32> to vector<2x1x32xf32>
    %89 = vector.shape_cast %88 : vector<2x1x32xf32> to vector<2x32xf32>
    %90 = vector.extract_strided_slice %85 {offsets = [0, 2, 0], sizes = [2, 1, 32], strides = [1, 1, 1]} : vector<2x8x32xf32> to vector<2x1x32xf32>
    %91 = vector.shape_cast %90 : vector<2x1x32xf32> to vector<2x32xf32>
    %92 = vector.extract_strided_slice %85 {offsets = [0, 3, 0], sizes = [2, 1, 32], strides = [1, 1, 1]} : vector<2x8x32xf32> to vector<2x1x32xf32>
    %93 = vector.shape_cast %92 : vector<2x1x32xf32> to vector<2x32xf32>
    %94 = vector.extract_strided_slice %85 {offsets = [0, 4, 0], sizes = [2, 1, 32], strides = [1, 1, 1]} : vector<2x8x32xf32> to vector<2x1x32xf32>
    %95 = vector.shape_cast %94 : vector<2x1x32xf32> to vector<2x32xf32>
    %96 = vector.extract_strided_slice %85 {offsets = [0, 5, 0], sizes = [2, 1, 32], strides = [1, 1, 1]} : vector<2x8x32xf32> to vector<2x1x32xf32>
    %97 = vector.shape_cast %96 : vector<2x1x32xf32> to vector<2x32xf32>
    %98 = vector.extract_strided_slice %85 {offsets = [0, 6, 0], sizes = [2, 1, 32], strides = [1, 1, 1]} : vector<2x8x32xf32> to vector<2x1x32xf32>
    %99 = vector.shape_cast %98 : vector<2x1x32xf32> to vector<2x32xf32>
    %100 = vector.extract_strided_slice %85 {offsets = [0, 7, 0], sizes = [2, 1, 32], strides = [1, 1, 1]} : vector<2x8x32xf32> to vector<2x1x32xf32>
    %101 = vector.shape_cast %100 : vector<2x1x32xf32> to vector<2x32xf32>
    %102 = tpu.concatenate %87, %89, %91, %93, %95, %97, %99, %101 in 1 : vector<2x32xf32>, vector<2x32xf32>, vector<2x32xf32>, vector<2x32xf32>, vector<2x32xf32>, vector<2x32xf32>, vector<2x32xf32>, vector<2x32xf32> -> vector<2x256xf32>
    %c0_30 = arith.constant 0 : index
    %c0_31 = arith.constant 0 : index
    %103 = vector.load %arg12[%c0_30, %c0_31] : memref<2x256xf32, #tpu.memory_space<vmem>>, vector<2x256xf32>
    tpu.vector_store %arg12[%c0_30, %c0_31], %102 {strides = array<i32>} : memref<2x256xf32, #tpu.memory_space<vmem>>, vector<2x256xf32>,
    return
  }
  func.func @transform_0(%arg0: i32) -> (i32, i32) {
    %c0_i32 = arith.constant 0 : i32
    %c0_i32_0 = arith.constant 0 : i32
    return %arg0, %c0_i32 : i32, i32
  }
  func.func @transform_1(%arg0: i32) -> (i32, i32) {
    %c0_i32 = arith.constant 0 : i32
    %c0_i32_0 = arith.constant 0 : i32
    %c0_i32_1 = arith.constant 0 : i32
    return %c0_i32, %c0_i32_0 : i32, i32
  }
  func.func @transform_2(%arg0: i32) -> (i32, i32) {
    %c0_i32 = arith.constant 0 : i32
    %c0_i32_0 = arith.constant 0 : i32
    %c0_i32_1 = arith.constant 0 : i32
    return %c0_i32, %c0_i32_0 : i32, i32
  }
  func.func @transform_3(%arg0: i32) -> (i32, i32) {
    %c0_i32 = arith.constant 0 : i32
    %c0_i32_0 = arith.constant 0 : i32
    %c0_i32_1 = arith.constant 0 : i32
    return %c0_i32, %c0_i32_0 : i32, i32
  }
  func.func @transform_4(%arg0: i32) -> (i32, i32) {
    %c0_i32 = arith.constant 0 : i32
    %c0_i32_0 = arith.constant 0 : i32
    %c0_i32_1 = arith.constant 0 : i32
    return %c0_i32, %c0_i32_0 : i32, i32
  }
  func.func @transform_5(%arg0: i32) -> (i32, i32) {
    %c0_i32 = arith.constant 0 : i32
    %c0_i32_0 = arith.constant 0 : i32
    %c0_i32_1 = arith.constant 0 : i32
    return %c0_i32, %c0_i32_0 : i32, i32
  }
  func.func @transform_6(%arg0: i32) -> (i32, i32) {
    %c0_i32 = arith.constant 0 : i32
    %c0_i32_0 = arith.constant 0 : i32
    %c0_i32_1 = arith.constant 0 : i32
    return %c0_i32, %c0_i32_0 : i32, i32
  }
  func.func @transform_7(%arg0: i32) -> (i32, i32) {
    %c0_i32 = arith.constant 0 : i32
    %c0_i32_0 = arith.constant 0 : i32
    %c0_i32_1 = arith.constant 0 : i32
    return %c0_i32, %c0_i32_0 : i32, i32
  }
  func.func @transform_8(%arg0: i32) -> (i32, i32) {
    %c0_i32 = arith.constant 0 : i32
    %c0_i32_0 = arith.constant 0 : i32
    %c0_i32_1 = arith.constant 0 : i32
    return %c0_i32, %c0_i32_0 : i32, i32
  }
  func.func @transform_9(%arg0: i32) -> (i32, i32) {
    %c0_i32 = arith.constant 0 : i32
    %c0_i32_0 = arith.constant 0 : i32
    %c0_i32_1 = arith.constant 0 : i32
    return %c0_i32, %c0_i32_0 : i32, i32
  }
  func.func @transform_10(%arg0: i32) -> (i32, i32) {
    %c0_i32 = arith.constant 0 : i32
    %c0_i32_0 = arith.constant 0 : i32
    %c0_i32_1 = arith.constant 0 : i32
    return %c0_i32, %c0_i32_0 : i32, i32
  }
  func.func @transform_11(%arg0: i32) -> (i32, i32) {
    %c0_i32 = arith.constant 0 : i32
    %c0_i32_0 = arith.constant 0 : i32
    return %arg0, %c0_i32 : i32, i32
  }
}

</mosaic_0001>

<llo_original>
// kernel: tpu_custom_call.1
$region0: #{tpu_custom_call.1}
  #allocation0 [shape = 'u32[]', space=smem, size = 0x4, offset = 0x4, fixed_abs, tag = 'smem constant byte address 0x4 - core index']
  #allocation1 [shape = 'u32[144,128]{1,0:T(1,128)}', space=vmem, size = 0x12000, scoped, tag = 'internal scratch']
  %s0 = inlined_call_operand.vmem [shape: f32[16,32], index: 0, kind: input, shape index: {}]
  %s1 = inlined_call_operand.vmem [shape: f32[32,384], index: 1, kind: input, shape index: {}]
  %s2 = inlined_call_operand.vmem [shape: f32[1,384], index: 2, kind: input, shape index: {}]
  %s3 = inlined_call_operand.vmem [shape: f32[128,64], index: 3, kind: input, shape index: {}]
  %s4 = inlined_call_operand.vmem [shape: f32[1,64], index: 4, kind: input, shape index: {}]
  %s5 = inlined_call_operand.vmem [shape: f32[128,64], index: 5, kind: input, shape index: {}]
  %s6 = inlined_call_operand.vmem [shape: f32[1,64], index: 6, kind: input, shape index: {}]
  %s7 = inlined_call_operand.vmem [shape: f32[128,64], index: 7, kind: input, shape index: {}]
  %s8 = inlined_call_operand.vmem [shape: f32[1,64], index: 8, kind: input, shape index: {}]
  %s9 = inlined_call_operand.vmem [shape: f32[64,32], index: 9, kind: input, shape index: {}]
  %s10 = inlined_call_operand.vmem [shape: f32[8,8], index: 10, kind: input, shape index: {}]
  %s11 = inlined_call_operand.hbm [shape: f32[2,256], index: 11, kind: output, shape index: {}]
  %s12 = sld [smem:[#allocation0]]
  $region54: #{tpu_custom_call.1} parent=0
    _
  %s14 = ssub.s32 1, %s12
  %s15 = scalar_select 0, %s14, %s12
  $region1: #{tpu_custom_call.1} parent=0
    #allocation2 [shape = 'u8[2048]{0}', space=vmem, size = 0x800, scoped, tag = 'output window, operand 0, single buffered']
    #allocation3 [shape = 's32[1]{0}', space=sflag, size = 0x4, scoped, tag = 'scoped memory for tpu_custom_call.1']
    %16 = vsyncpa [#allocation3], 0
    // Predicated region
    $region2: #{tpu_custom_call.1} parent=1 // pred_check
      _
    $region3: #{tpu_custom_call.1} parent=1 // pred_check_branch
      %18 = sbr.rel (0) target = $region5
    $region4: #{tpu_custom_call.1} parent=1 // pred_region
      _
    $region5: #{tpu_custom_call.1} parent=1 // pred_fallthru
      _
    // Predicated region
    $region6: #{tpu_custom_call.1} parent=1 // pred_check
      _
    $region7: #{tpu_custom_call.1} parent=1 // pred_check_branch
      %20 = sbr.rel (0) target = $region9
    $region8: #{tpu_custom_call.1} parent=1 // pred_region
      _
    $region9: #{tpu_custom_call.1} parent=1 // pred_fallthru
      _
    // Predicated region
    $region10: #{tpu_custom_call.1} parent=1 // pred_check
      _
    $region11: #{tpu_custom_call.1} parent=1 // pred_check_branch
      %22 = sbr.rel (0) target = $region13
    $region12: #{tpu_custom_call.1} parent=1 // pred_region
      _
    $region13: #{tpu_custom_call.1} parent=1 // pred_fallthru
      _
    // Predicated region
    $region14: #{tpu_custom_call.1} parent=1 // pred_check
      _
    $region15: #{tpu_custom_call.1} parent=1 // pred_check_branch
      %24 = sbr.rel (0) target = $region17
    $region16: #{tpu_custom_call.1} parent=1 // pred_region
      _
    $region17: #{tpu_custom_call.1} parent=1 // pred_fallthru
      _
    // Predicated region
    $region18: #{tpu_custom_call.1} parent=1 // pred_check
      _
    $region19: #{tpu_custom_call.1} parent=1 // pred_check_branch
      %26 = sbr.rel (0) target = $region21
    $region20: #{tpu_custom_call.1} parent=1 // pred_region
      _
    $region21: #{tpu_custom_call.1} parent=1 // pred_fallthru
      _
    // Predicated region
    $region22: #{tpu_custom_call.1} parent=1 // pred_check
      _
    $region23: #{tpu_custom_call.1} parent=1 // pred_check_branch
      %28 = sbr.rel (0) target = $region25
    $region24: #{tpu_custom_call.1} parent=1 // pred_region
      _
    $region25: #{tpu_custom_call.1} parent=1 // pred_fallthru
      _
    // Predicated region
    $region26: #{tpu_custom_call.1} parent=1 // pred_check
      _
    $region27: #{tpu_custom_call.1} parent=1 // pred_check_branch
      %30 = sbr.rel (0) target = $region29
    $region28: #{tpu_custom_call.1} parent=1 // pred_region
      _
    $region29: #{tpu_custom_call.1} parent=1 // pred_fallthru
      _
    // Predicated region
    $region30: #{tpu_custom_call.1} parent=1 // pred_check
      _
    $region31: #{tpu_custom_call.1} parent=1 // pred_check_branch
      %32 = sbr.rel (0) target = $region33
    $region32: #{tpu_custom_call.1} parent=1 // pred_region
      _
    $region33: #{tpu_custom_call.1} parent=1 // pred_fallthru
      _
    // Predicated region
    $region34: #{tpu_custom_call.1} parent=1 // pred_check
      _
    $region35: #{tpu_custom_call.1} parent=1 // pred_check_branch
      %34 = sbr.rel (0) target = $region37
    $region36: #{tpu_custom_call.1} parent=1 // pred_region
      _
    $region37: #{tpu_custom_call.1} parent=1 // pred_fallthru
      _
    // Predicated region
    $region38: #{tpu_custom_call.1} parent=1 // pred_check
      _
    $region39: #{tpu_custom_call.1} parent=1 // pred_check_branch
      %36 = sbr.rel (0) target = $region41
    $region40: #{tpu_custom_call.1} parent=1 // pred_region
      _
    $region41: #{tpu_custom_call.1} parent=1 // pred_fallthru
      _
    // Predicated region
    $region42: #{tpu_custom_call.1} parent=1 // pred_check
      _
    $region43: #{tpu_custom_call.1} parent=1 // pred_check_branch
      %38 = sbr.rel (0) target = $region45
    $region44: #{tpu_custom_call.1} parent=1 // pred_region
      _
    $region45: #{tpu_custom_call.1} parent=1 // pred_fallthru
      _
    %v39 = vld [vmem:[%s0] sm:$0xff]
    %v40 = vld [vmem:[%s0 + $0x8] sm:$0xff]
    %v41 = vld [vmem:[%s1] sm:$0xff]
    %v42 = vld [vmem:[%s1 + $0x8] sm:$0xff]
    %v43 = vld [vmem:[%s1 + $0x10] sm:$0xff]
    %v44 = vld [vmem:[%s1 + $0x18] sm:$0xff]
    %v45 = vld [vmem:[%s1 + $0x20] sm:$0xff]
    %v46 = vld [vmem:[%s1 + $0x28] sm:$0xff]
    %v47 = vld [vmem:[%s1 + $0x30] sm:$0xff]
    %v48 = vld [vmem:[%s1 + $0x38] sm:$0xff]
    %v49 = vld [vmem:[%s1 + $0x40] sm:$0xff]
    %v50 = vld [vmem:[%s1 + $0x48] sm:$0xff]
    %v51 = vld [vmem:[%s1 + $0x50] sm:$0xff]
    %v52 = vld [vmem:[%s1 + $0x58] sm:$0xff]
    %v53 = vld [vmem:[%s2] sm:$0x7]
    %v55 = vlaneseq
    %v56 = vshrl.u32 %v55, 7
    %v57 = vsub.s32 0, %v56
    %v58 = vrot.slane %v53, %v57
    %v59 = vlaneseq
    %v60 = vshrl.u32 %v59, 7
    %v61 = vsub.s32 1, %v60
    %v62 = vrot.slane %v53, %v61
    %v63 = vlaneseq
    %v64 = vshrl.u32 %v63, 7
    %v65 = vsub.s32 2, %v64
    %v66 = vrot.slane %v53, %v65
    %vm70 = vcmask 261120
    %v72 = vsel %vm70, %v39, 0
    %v75 = vsel %vm70, %v40, 0
    %77 = vmatprep.subr.mxu0 %v42
    %78 = vmatpush1.msra.mxu0 %v41
    %79 = vmatprep.subr.mxu0 %v45
    %80 = vmatpush1.msra.mxu0 %v44
    %81 = vmatprep.subr.mxu0 %v48
    %82 = vmatpush1.msra.mxu0 %v47
    %83 = vmatprep.subr.mxu0 %v51
    %84 = vmatpush1.msra.mxu0 %v50
    %85 = vmatprep.subr.mxu0 0.0
    %86 = vmatpush1.msra.mxu0 0.0
    %87 = vmatprep.subr.mxu0 0.0
    %88 = vmatpush1.msra.mxu0 0.0
    %89 = vmatprep.subr.mxu0 0.0
    %90 = vmatpush1.msra.mxu0 0.0
    %91 = vmatprep.subr.mxu0 0.0
    %92 = vmatpush1.msra.mxu0 0.0
    %93 = vmatprep.subr.mxu0 0.0
    %94 = vmatpush1.msra.mxu0 0.0
    %95 = vmatprep.subr.mxu0 0.0
    %96 = vmatpush1.msra.mxu0 0.0
    %97 = vmatprep.subr.mxu0 0.0
    %98 = vmatpush1.msra.mxu0 0.0
    %99 = vmatprep.subr.mxu0 0.0
    %100 = vmatpush1.msra.mxu0 0.0
    %101 = vmatprep.subr.mxu0 0.0
    %102 = vmatpush1.msra.mxu0 0.0
    %103 = vmatprep.subr.mxu0 0.0
    %104 = vmatpush1.msra.mxu0 0.0
    %105 = vmatprep.subr.mxu0 0.0
    %106 = vmatpush1.msra.mxu0 0.0
    %107 = vmatprep.subr.mxu0 0.0
    %108 = vmatpush1.msra.mxu0 0.0
    %109 = vmatprep.subr.mxu0 0.0
    %110 = vmatpush1.msra.mxu0 0.0
    %111 = vmatprep.subr.mxu0 0.0
    %112 = vmatpush1.msra.mxu0 0.0
    %113 = vmatprep.subr.mxu0 0.0
    %114 = vmatpush1.msra.mxu0 0.0
    %115 = vmatprep.subr.mxu0 0.0
    %116 = vmatpush1.msra.mxu0 0.0
    %117 = vmatprep.subr.mxu0 0.0
    %118 = vmatpush1.msra.mxu0 0.0
    %119 = vmatprep.subr.mxu0 0.0
    %120 = vmatpush1.msra.mxu0 0.0
    %121 = vmatprep.subr.mxu0 0.0
    %122 = vmatpush1.msra.mxu0 0.0
    %123 = vmatprep.subr.mxu0 0.0
    %124 = vmatpush1.msra.mxu0 0.0
    %125 = vmatprep.subr.mxu0 0.0
    %126 = vmatpush1.msra.mxu0 0.0
    %127 = vmatprep.subr.mxu0 0.0
    %128 = vmatpush1.msra.mxu0 0.0
    %129 = vmatprep.subr.mxu0 0.0
    %130 = vmatpush1.msra.mxu0 0.0
    %131 = vmatprep.subr.mxu0 0.0
    %132 = vmatpush1.msra.mxu0 0.0
    %133 = vmatprep.subr.mxu0 0.0
    %134 = vmatpush1.msra.mxu0 0.0
    %135 = vmatprep.subr.mxu0 0.0
    %136 = vmatpush1.msra.mxu0 0.0
    %137 = vmatprep.subr.mxu0 0.0
    %138 = vmatpush1.msra.mxu0 0.0
    %139 = vmatprep.subr.mxu0 0.0
    %140 = vmatpush1.msra.mxu0 0.0
    %141 = vmatprep.mubr.f32.mxu0 0.0
    %142 = vmatmul.mubr.f32.gmra.mrb[0].mxu0 %v72
    %v143 = vpop.f32.mrb[0].mxu0
    %v144 = vadd.f32 %v58, %v143
    %v145 = vpop.f32.mrb[0].mxu0
    %v146 = vadd.f32 %v62, %v145
    %147 = vmatprep.mubr.f32.mxu0 0.0
    %148 = vmatmul.mubr.f32.gmra.mrb[0].mxu0 %v75
    %v149 = vpop.f32.mrb[0].mxu0
    %v150 = vadd.f32 %v58, %v149
    %v151 = vpop.f32.mrb[0].mxu0
    %v152 = vadd.f32 %v62, %v151
    %153 = vdwg.mxu0
    %154 = vmatprep.subr.mxu0 0.0
    %155 = vmatpush1.msra.mxu0 %v43
    %156 = vmatprep.subr.mxu0 0.0
    %157 = vmatpush1.msra.mxu0 %v46
    %158 = vmatprep.subr.mxu0 0.0
    %159 = vmatpush1.msra.mxu0 %v49
    %160 = vmatprep.subr.mxu0 0.0
    %161 = vmatpush1.msra.mxu0 %v52
    %162 = vmatprep.subr.mxu0 0.0
    %163 = vmatpush1.msra.mxu0 0.0
    %164 = vmatprep.subr.mxu0 0.0
    %165 = vmatpush1.msra.mxu0 0.0
    %166 = vmatprep.subr.mxu0 0.0
    %167 = vmatpush1.msra.mxu0 0.0
    %168 = vmatprep.subr.mxu0 0.0
    %169 = vmatpush1.msra.mxu0 0.0
    %170 = vmatprep.subr.mxu0 0.0
    %171 = vmatpush1.msra.mxu0 0.0
    %172 = vmatprep.subr.mxu0 0.0
    %173 = vmatpush1.msra.mxu0 0.0
    %174 = vmatprep.subr.mxu0 0.0
    %175 = vmatpush1.msra.mxu0 0.0
    %176 = vmatprep.subr.mxu0 0.0
    %177 = vmatpush1.msra.mxu0 0.0
    %178 = vmatprep.subr.mxu0 0.0
    %179 = vmatpush1.msra.mxu0 0.0
    %180 = vmatprep.subr.mxu0 0.0
    %181 = vmatpush1.msra.mxu0 0.0
    %182 = vmatprep.subr.mxu0 0.0
    %183 = vmatpush1.msra.mxu0 0.0
    %184 = vmatprep.subr.mxu0 0.0
    %185 = vmatpush1.msra.mxu0 0.0
    %186 = vmatprep.subr.mxu0 0.0
    %187 = vmatpush1.msra.mxu0 0.0
    %188 = vmatprep.subr.mxu0 0.0
    %189 = vmatpush1.msra.mxu0 0.0
    %190 = vmatprep.subr.mxu0 0.0
    %191 = vmatpush1.msra.mxu0 0.0
    %192 = vmatprep.subr.mxu0 0.0
    %193 = vmatpush1.msra.mxu0 0.0
    %194 = vmatprep.subr.mxu0 0.0
    %195 = vmatpush1.msra.mxu0 0.0
    %196 = vmatprep.subr.mxu0 0.0
    %197 = vmatpush1.msra.mxu0 0.0
    %198 = vmatprep.subr.mxu0 0.0
    %199 = vmatpush1.msra.mxu0 0.0
    %200 = vmatprep.subr.mxu0 0.0
    %201 = vmatpush1.msra.mxu0 0.0
    %202 = vmatprep.subr.mxu0 0.0
    %203 = vmatpush1.msra.mxu0 0.0
    %204 = vmatprep.subr.mxu0 0.0
    %205 = vmatpush1.msra.mxu0 0.0
    %206 = vmatprep.subr.mxu0 0.0
    %207 = vmatpush1.msra.mxu0 0.0
    %208 = vmatprep.subr.mxu0 0.0
    %209 = vmatpush1.msra.mxu0 0.0
    %210 = vmatprep.subr.mxu0 0.0
    %211 = vmatpush1.msra.mxu0 0.0
    %212 = vmatprep.subr.mxu0 0.0
    %213 = vmatpush1.msra.mxu0 0.0
    %214 = vmatprep.subr.mxu0 0.0
    %215 = vmatpush1.msra.mxu0 0.0
    %216 = vmatprep.subr.mxu0 0.0
    %217 = vmatpush1.msra.mxu0 0.0
    %218 = vmatprep.mubr.f32.mxu0 0.0
    %219 = vmatmul.mubr.f32.gmra.mrb[0].mxu0 %v72
    %v220 = vpop.f32.mrb[0].mxu0
    %v221 = vadd.f32 %v66, %v220
    %v222 = vpop.f32.mrb[0].mxu0
    %223 = vmatprep.mubr.f32.mxu0 0.0
    %224 = vmatmul.mubr.f32.gmra.mrb[0].mxu0 %v75
    %v225 = vpop.f32.mrb[0].mxu0
    %v226 = vadd.f32 %v66, %v225
    %v227 = vpop.f32.mrb[0].mxu0
    %228 = vdwg.mxu0
    %v229 = vmul.f32 %v144, 0.01
    %v230 = vmul.f32 %v146, 0.01
    %v231 = vmul.f32 %v221, 0.01
    %v232 = vmul.f32 %v150, 0.01
    %v233 = vmul.f32 %v152, 0.01
    %v234 = vmul.f32 %v226, 0.01
    %v235 = vmax.f32 %v144, %v229
    %v236 = vmax.f32 %v146, %v230
    %v237 = vmax.f32 %v221, %v231
    %v238 = vmax.f32 %v150, %v232
    %v239 = vmax.f32 %v152, %v233
    %v240 = vmax.f32 %v226, %v234
    %v241 = vld [vmem:[%s3] sm:$0xff]
    %v242 = vld [vmem:[%s3 + $0x8] sm:$0xff]
    %v243 = vld [vmem:[%s3 + $0x10] sm:$0xff]
    %v244 = vld [vmem:[%s3 + $0x18] sm:$0xff]
    %v245 = vld [vmem:[%s3 + $0x20] sm:$0xff]
    %v246 = vld [vmem:[%s3 + $0x28] sm:$0xff]
    %v247 = vld [vmem:[%s3 + $0x30] sm:$0xff]
    %v248 = vld [vmem:[%s3 + $0x38] sm:$0xff]
    %v249 = vld [vmem:[%s3 + $0x40] sm:$0xff]
    %v250 = vld [vmem:[%s3 + $0x48] sm:$0xff]
    %v251 = vld [vmem:[%s3 + $0x50] sm:$0xff]
    %v252 = vld [vmem:[%s3 + $0x58] sm:$0xff]
    %v253 = vld [vmem:[%s3 + $0x60] sm:$0xff]
    %v254 = vld [vmem:[%s3 + $0x68] sm:$0xff]
    %v255 = vld [vmem:[%s3 + $0x70] sm:$0xff]
    %v256 = vld [vmem:[%s3 + $0x78] sm:$0xff]
    %v257 = vld [vmem:[%s4] sm:$0x1]
    %v259 = vlaneseq
    %v260 = vshrl.u32 %v259, 7
    %v261 = vsub.s32 0, %v260
    %v262 = vrot.slane %v257, %v261
    %264 = vmatprep.subr.mxu0 0.0
    %265 = vmatpush1.msra.mxu0 %v241
    %266 = vmatprep.subr.mxu0 0.0
    %267 = vmatpush1.msra.mxu0 %v242
    %268 = vmatprep.subr.mxu0 0.0
    %269 = vmatpush1.msra.mxu0 %v243
    %270 = vmatprep.subr.mxu0 0.0
    %271 = vmatpush1.msra.mxu0 %v244
    %272 = vmatprep.subr.mxu0 0.0
    %273 = vmatpush1.msra.mxu0 %v245
    %274 = vmatprep.subr.mxu0 0.0
    %275 = vmatpush1.msra.mxu0 %v246
    %276 = vmatprep.subr.mxu0 0.0
    %277 = vmatpush1.msra.mxu0 %v247
    %278 = vmatprep.subr.mxu0 0.0
    %279 = vmatpush1.msra.mxu0 %v248
    %280 = vmatprep.subr.mxu0 0.0
    %281 = vmatpush1.msra.mxu0 %v249
    %282 = vmatprep.subr.mxu0 0.0
    %283 = vmatpush1.msra.mxu0 %v250
    %284 = vmatprep.subr.mxu0 0.0
    %285 = vmatpush1.msra.mxu0 %v251
    %286 = vmatprep.subr.mxu0 0.0
    %287 = vmatpush1.msra.mxu0 %v252
    %288 = vmatprep.subr.mxu0 0.0
    %289 = vmatpush1.msra.mxu0 %v253
    %290 = vmatprep.subr.mxu0 0.0
    %291 = vmatpush1.msra.mxu0 %v254
    %292 = vmatprep.subr.mxu0 0.0
    %293 = vmatpush1.msra.mxu0 %v255
    %294 = vmatprep.subr.mxu0 0.0
    %295 = vmatpush1.msra.mxu0 %v256
    %296 = vmatprep.subr.mxu0 0.0
    %297 = vmatpush1.msra.mxu0 0.0
    %298 = vmatprep.subr.mxu0 0.0
    %299 = vmatpush1.msra.mxu0 0.0
    %300 = vmatprep.subr.mxu0 0.0
    %301 = vmatpush1.msra.mxu0 0.0
    %302 = vmatprep.subr.mxu0 0.0
    %303 = vmatpush1.msra.mxu0 0.0
    %304 = vmatprep.subr.mxu0 0.0
    %305 = vmatpush1.msra.mxu0 0.0
    %306 = vmatprep.subr.mxu0 0.0
    %307 = vmatpush1.msra.mxu0 0.0
    %308 = vmatprep.subr.mxu0 0.0
    %309 = vmatpush1.msra.mxu0 0.0
    %310 = vmatprep.subr.mxu0 0.0
    %311 = vmatpush1.msra.mxu0 0.0
    %312 = vmatprep.subr.mxu0 0.0
    %313 = vmatpush1.msra.mxu0 0.0
    %314 = vmatprep.subr.mxu0 0.0
    %315 = vmatpush1.msra.mxu0 0.0
    %316 = vmatprep.subr.mxu0 0.0
    %317 = vmatpush1.msra.mxu0 0.0
    %318 = vmatprep.subr.mxu0 0.0
    %319 = vmatpush1.msra.mxu0 0.0
    %320 = vmatprep.subr.mxu0 0.0
    %321 = vmatpush1.msra.mxu0 0.0
    %322 = vmatprep.subr.mxu0 0.0
    %323 = vmatpush1.msra.mxu0 0.0
    %324 = vmatprep.subr.mxu0 0.0
    %325 = vmatpush1.msra.mxu0 0.0
    %326 = vmatprep.subr.mxu0 0.0
    %327 = vmatpush1.msra.mxu0 0.0
    %328 = vmatprep.mubr.f32.mxu0 0.0
    %329 = vmatmul.mubr.f32.gmra.mrb[0].mxu0 %v235
    %v330 = vpop.f32.mrb[0].mxu0
    %v331 = vadd.f32 %v262, %v330
    %v332 = vpop.f32.mrb[0].mxu0
    %333 = vmatprep.mubr.f32.mxu0 0.0
    %334 = vmatmul.mubr.f32.gmra.mrb[0].mxu0 %v238
    %v335 = vpop.f32.mrb[0].mxu0
    %v336 = vadd.f32 %v262, %v335
    %v337 = vpop.f32.mrb[0].mxu0
    %338 = vdwg.mxu0
    %v339 = vld [vmem:[%s5] sm:$0xff]
    %v340 = vld [vmem:[%s5 + $0x8] sm:$0xff]
    %v341 = vld [vmem:[%s5 + $0x10] sm:$0xff]
    %v342 = vld [vmem:[%s5 + $0x18] sm:$0xff]
    %v343 = vld [vmem:[%s5 + $0x20] sm:$0xff]
    %v344 = vld [vmem:[%s5 + $0x28] sm:$0xff]
    %v345 = vld [vmem:[%s5 + $0x30] sm:$0xff]
    %v346 = vld [vmem:[%s5 + $0x38] sm:$0xff]
    %v347 = vld [vmem:[%s5 + $0x40] sm:$0xff]
    %v348 = vld [vmem:[%s5 + $0x48] sm:$0xff]
    %v349 = vld [vmem:[%s5 + $0x50] sm:$0xff]
    %v350 = vld [vmem:[%s5 + $0x58] sm:$0xff]
    %v351 = vld [vmem:[%s5 + $0x60] sm:$0xff]
    %v352 = vld [vmem:[%s5 + $0x68] sm:$0xff]
    %v353 = vld [vmem:[%s5 + $0x70] sm:$0xff]
    %v354 = vld [vmem:[%s5 + $0x78] sm:$0xff]
    %v355 = vld [vmem:[%s6] sm:$0x1]
    %v357 = vlaneseq
    %v358 = vshrl.u32 %v357, 7
    %v359 = vsub.s32 0, %v358
    %v360 = vrot.slane %v355, %v359
    %362 = vmatprep.subr.mxu0 0.0
    %363 = vmatpush1.msra.mxu0 %v339
    %364 = vmatprep.subr.mxu0 0.0
    %365 = vmatpush1.msra.mxu0 %v340
    %366 = vmatprep.subr.mxu0 0.0
    %367 = vmatpush1.msra.mxu0 %v341
    %368 = vmatprep.subr.mxu0 0.0
    %369 = vmatpush1.msra.mxu0 %v342
    %370 = vmatprep.subr.mxu0 0.0
    %371 = vmatpush1.msra.mxu0 %v343
    %372 = vmatprep.subr.mxu0 0.0
    %373 = vmatpush1.msra.mxu0 %v344
    %374 = vmatprep.subr.mxu0 0.0
    %375 = vmatpush1.msra.mxu0 %v345
    %376 = vmatprep.subr.mxu0 0.0
    %377 = vmatpush1.msra.mxu0 %v346
    %378 = vmatprep.subr.mxu0 0.0
    %379 = vmatpush1.msra.mxu0 %v347
    %380 = vmatprep.subr.mxu0 0.0
    %381 = vmatpush1.msra.mxu0 %v348
    %382 = vmatprep.subr.mxu0 0.0
    %383 = vmatpush1.msra.mxu0 %v349
    %384 = vmatprep.subr.mxu0 0.0
    %385 = vmatpush1.msra.mxu0 %v350
    %386 = vmatprep.subr.mxu0 0.0
    %387 = vmatpush1.msra.mxu0 %v351
    %388 = vmatprep.subr.mxu0 0.0
    %389 = vmatpush1.msra.mxu0 %v352
    %390 = vmatprep.subr.mxu0 0.0
    %391 = vmatpush1.msra.mxu0 %v353
    %392 = vmatprep.subr.mxu0 0.0
    %393 = vmatpush1.msra.mxu0 %v354
    %394 = vmatprep.subr.mxu0 0.0
    %395 = vmatpush1.msra.mxu0 0.0
    %396 = vmatprep.subr.mxu0 0.0
    %397 = vmatpush1.msra.mxu0 0.0
    %398 = vmatprep.subr.mxu0 0.0
    %399 = vmatpush1.msra.mxu0 0.0
    %400 = vmatprep.subr.mxu0 0.0
    %401 = vmatpush1.msra.mxu0 0.0
    %402 = vmatprep.subr.mxu0 0.0
    %403 = vmatpush1.msra.mxu0 0.0
    %404 = vmatprep.subr.mxu0 0.0
    %405 = vmatpush1.msra.mxu0 0.0
    %406 = vmatprep.subr.mxu0 0.0
    %407 = vmatpush1.msra.mxu0 0.0
    %408 = vmatprep.subr.mxu0 0.0
    %409 = vmatpush1.msra.mxu0 0.0
    %410 = vmatprep.subr.mxu0 0.0
    %411 = vmatpush1.msra.mxu0 0.0
    %412 = vmatprep.subr.mxu0 0.0
    %413 = vmatpush1.msra.mxu0 0.0
    %414 = vmatprep.subr.mxu0 0.0
    %415 = vmatpush1.msra.mxu0 0.0
    %416 = vmatprep.subr.mxu0 0.0
    %417 = vmatpush1.msra.mxu0 0.0
    %418 = vmatprep.subr.mxu0 0.0
    %419 = vmatpush1.msra.mxu0 0.0
    %420 = vmatprep.subr.mxu0 0.0
    %421 = vmatpush1.msra.mxu0 0.0
    %422 = vmatprep.subr.mxu0 0.0
    %423 = vmatpush1.msra.mxu0 0.0
    %424 = vmatprep.subr.mxu0 0.0
    %425 = vmatpush1.msra.mxu0 0.0
    %426 = vmatprep.mubr.f32.mxu0 0.0
    %427 = vmatmul.mubr.f32.gmra.mrb[0].mxu0 %v236
    %v428 = vpop.f32.mrb[0].mxu0
    %v429 = vadd.f32 %v360, %v428
    %v430 = vpop.f32.mrb[0].mxu0
    %431 = vmatprep.mubr.f32.mxu0 0.0
    %432 = vmatmul.mubr.f32.gmra.mrb[0].mxu0 %v239
    %v433 = vpop.f32.mrb[0].mxu0
    %v434 = vadd.f32 %v360, %v433
    %v435 = vpop.f32.mrb[0].mxu0
    %436 = vdwg.mxu0
    %v437 = vld [vmem:[%s7] sm:$0xff]
    %v438 = vld [vmem:[%s7 + $0x8] sm:$0xff]
    %v439 = vld [vmem:[%s7 + $0x10] sm:$0xff]
    %v440 = vld [vmem:[%s7 + $0x18] sm:$0xff]
    %v441 = vld [vmem:[%s7 + $0x20] sm:$0xff]
    %v442 = vld [vmem:[%s7 + $0x28] sm:$0xff]
    %v443 = vld [vmem:[%s7 + $0x30] sm:$0xff]
    %v444 = vld [vmem:[%s7 + $0x38] sm:$0xff]
    %v445 = vld [vmem:[%s7 + $0x40] sm:$0xff]
    %v446 = vld [vmem:[%s7 + $0x48] sm:$0xff]
    %v447 = vld [vmem:[%s7 + $0x50] sm:$0xff]
    %v448 = vld [vmem:[%s7 + $0x58] sm:$0xff]
    %v449 = vld [vmem:[%s7 + $0x60] sm:$0xff]
    %v450 = vld [vmem:[%s7 + $0x68] sm:$0xff]
    %v451 = vld [vmem:[%s7 + $0x70] sm:$0xff]
    %v452 = vld [vmem:[%s7 + $0x78] sm:$0xff]
    %v453 = vld [vmem:[%s8] sm:$0x1]
    %v455 = vlaneseq
    %v456 = vshrl.u32 %v455, 7
    %v457 = vsub.s32 0, %v456
    %v458 = vrot.slane %v453, %v457
    %460 = vmatprep.subr.mxu0 0.0
    %461 = vmatpush1.msra.mxu0 %v437
    %462 = vmatprep.subr.mxu0 0.0
    %463 = vmatpush1.msra.mxu0 %v438
    %464 = vmatprep.subr.mxu0 0.0
    %465 = vmatpush1.msra.mxu0 %v439
    %466 = vmatprep.subr.mxu0 0.0
    %467 = vmatpush1.msra.mxu0 %v440
    %468 = vmatprep.subr.mxu0 0.0
    %469 = vmatpush1.msra.mxu0 %v441
    %470 = vmatprep.subr.mxu0 0.0
    %471 = vmatpush1.msra.mxu0 %v442
    %472 = vmatprep.subr.mxu0 0.0
    %473 = vmatpush1.msra.mxu0 %v443
    %474 = vmatprep.subr.mxu0 0.0
    %475 = vmatpush1.msra.mxu0 %v444
    %476 = vmatprep.subr.mxu0 0.0
    %477 = vmatpush1.msra.mxu0 %v445
    %478 = vmatprep.subr.mxu0 0.0
    %479 = vmatpush1.msra.mxu0 %v446
    %480 = vmatprep.subr.mxu0 0.0
    %481 = vmatpush1.msra.mxu0 %v447
    %482 = vmatprep.subr.mxu0 0.0
    %483 = vmatpush1.msra.mxu0 %v448
    %484 = vmatprep.subr.mxu0 0.0
    %485 = vmatpush1.msra.mxu0 %v449
    %486 = vmatprep.subr.mxu0 0.0
    %487 = vmatpush1.msra.mxu0 %v450
    %488 = vmatprep.subr.mxu0 0.0
    %489 = vmatpush1.msra.mxu0 %v451
    %490 = vmatprep.subr.mxu0 0.0
    %491 = vmatpush1.msra.mxu0 %v452
    %492 = vmatprep.subr.mxu0 0.0
    %493 = vmatpush1.msra.mxu0 0.0
    %494 = vmatprep.subr.mxu0 0.0
    %495 = vmatpush1.msra.mxu0 0.0
    %496 = vmatprep.subr.mxu0 0.0
    %497 = vmatpush1.msra.mxu0 0.0
    %498 = vmatprep.subr.mxu0 0.0
    %499 = vmatpush1.msra.mxu0 0.0
    %500 = vmatprep.subr.mxu0 0.0
    %501 = vmatpush1.msra.mxu0 0.0
    %502 = vmatprep.subr.mxu0 0.0
    %503 = vmatpush1.msra.mxu0 0.0
    %504 = vmatprep.subr.mxu0 0.0
    %505 = vmatpush1.msra.mxu0 0.0
    %506 = vmatprep.subr.mxu0 0.0
    %507 = vmatpush1.msra.mxu0 0.0
    %508 = vmatprep.subr.mxu0 0.0
    %509 = vmatpush1.msra.mxu0 0.0
    %510 = vmatprep.subr.mxu0 0.0
    %511 = vmatpush1.msra.mxu0 0.0
    %512 = vmatprep.subr.mxu0 0.0
    %513 = vmatpush1.msra.mxu0 0.0
    %514 = vmatprep.subr.mxu0 0.0
    %515 = vmatpush1.msra.mxu0 0.0
    %516 = vmatprep.subr.mxu0 0.0
    %517 = vmatpush1.msra.mxu0 0.0
    %518 = vmatprep.subr.mxu0 0.0
    %519 = vmatpush1.msra.mxu0 0.0
    %520 = vmatprep.subr.mxu0 0.0
    %521 = vmatpush1.msra.mxu0 0.0
    %522 = vmatprep.subr.mxu0 0.0
    %523 = vmatpush1.msra.mxu0 0.0
    %524 = vmatprep.mubr.f32.mxu0 0.0
    %525 = vmatmul.mubr.f32.gmra.mrb[0].mxu0 %v237
    %v526 = vpop.f32.mrb[0].mxu0
    %v527 = vadd.f32 %v458, %v526
    %v528 = vpop.f32.mrb[0].mxu0
    %529 = vmatprep.mubr.f32.mxu0 0.0
    %530 = vmatmul.mubr.f32.gmra.mrb[0].mxu0 %v240
    %v531 = vpop.f32.mrb[0].mxu0
    %v532 = vadd.f32 %v458, %v531
    %v533 = vpop.f32.mrb[0].mxu0
    %534 = vdwg.mxu0
    %v535 = vmul.f32 %v331, %v331
    %v536 = vmul.f32 %v336, %v336
    %539 = vrot.lane.b32.xlu0 %v535, 96
    %v540 = vpop.permute.xlu0 %539
    %541 = vrot.lane.b32.xlu0 %v536, 96
    %v542 = vpop.permute.xlu0 %541
    %v545 = vadd.f32 %v535, %v540
    %v546 = vadd.f32 %v536, %v542
    %v547 = vrsqrt.pop %v545
    %v548 = vmul.f32 %v545, %v547
    %vm549 = vcmp.eq.f32.partialorder %v545, inf
    %v550 = vsel %vm549, %v545, %v548
    %vm551 = vcmp.eq.f32.partialorder %v545, 0.0
    %v552 = vand.u32 %v545, 2147483648
    %v553 = vsel %vm551, %v552, %v550
    %v554 = vrsqrt.pop %v546
    %v555 = vmul.f32 %v546, %v554
    %vm556 = vcmp.eq.f32.partialorder %v546, inf
    %v557 = vsel %vm556, %v546, %v555
    %vm558 = vcmp.eq.f32.partialorder %v546, 0.0
    %v559 = vand.u32 %v546, 2147483648
    %v560 = vsel %vm558, %v559, %v557
    %v561 = vadd.f32 %v553, 1e-08
    %v562 = vadd.f32 %v560, 1e-08
    %v563 = vrcp.pop %v561
    %v564 = vrcp.pop %v562
    %v565 = vmul.f32 %v331, %v563
    %v566 = vmul.f32 %v336, %v564
    %569 = vrot.lane.b32.xlu0 %v563, 32
    %v570 = vpop.permute.xlu0 %569
    %571 = vrot.lane.b32.xlu0 %v564, 32
    %v572 = vpop.permute.xlu0 %571
    %v575 = vmul.f32 %v331, %v570
    %v576 = vmul.f32 %v336, %v572
    %v577 = vmul.f32 %v429, %v429
    %v578 = vmul.f32 %v434, %v434
    %581 = vrot.lane.b32.xlu0 %v577, 96
    %v582 = vpop.permute.xlu0 %581
    %583 = vrot.lane.b32.xlu0 %v578, 96
    %v584 = vpop.permute.xlu0 %583
    %v587 = vadd.f32 %v577, %v582
    %v588 = vadd.f32 %v578, %v584
    %v589 = vrsqrt.pop %v587
    %v590 = vmul.f32 %v587, %v589
    %vm591 = vcmp.eq.f32.partialorder %v587, inf
    %v592 = vsel %vm591, %v587, %v590
    %vm593 = vcmp.eq.f32.partialorder %v587, 0.0
    %v594 = vand.u32 %v587, 2147483648
    %v595 = vsel %vm593, %v594, %v592
    %v596 = vrsqrt.pop %v588
    %v597 = vmul.f32 %v588, %v596
    %vm598 = vcmp.eq.f32.partialorder %v588, inf
    %v599 = vsel %vm598, %v588, %v597
    %vm600 = vcmp.eq.f32.partialorder %v588, 0.0
    %v601 = vand.u32 %v588, 2147483648
    %v602 = vsel %vm600, %v601, %v599
    %v603 = vadd.f32 %v595, 1e-08
    %v604 = vadd.f32 %v602, 1e-08
    %v605 = vrcp.pop %v603
    %v606 = vrcp.pop %v604
    %v607 = vmul.f32 %v429, %v605
    %v608 = vmul.f32 %v434, %v606
    %611 = vrot.lane.b32.xlu0 %v605, 32
    %v612 = vpop.permute.xlu0 %611
    %613 = vrot.lane.b32.xlu0 %v606, 32
    %v614 = vpop.permute.xlu0 %613
    %v617 = vmul.f32 %v429, %v612
    %v618 = vmul.f32 %v434, %v614
    %v619 = vmul.f32 %v527, %v527
    %v620 = vmul.f32 %v532, %v532
    %623 = vrot.lane.b32.xlu0 %v619, 96
    %v624 = vpop.permute.xlu0 %623
    %625 = vrot.lane.b32.xlu0 %v620, 96
    %v626 = vpop.permute.xlu0 %625
    %v629 = vadd.f32 %v619, %v624
    %v630 = vadd.f32 %v620, %v626
    %v631 = vrsqrt.pop %v629
    %v632 = vmul.f32 %v629, %v631
    %vm633 = vcmp.eq.f32.partialorder %v629, inf
    %v634 = vsel %vm633, %v629, %v632
    %vm635 = vcmp.eq.f32.partialorder %v629, 0.0
    %v636 = vand.u32 %v629, 2147483648
    %v637 = vsel %vm635, %v636, %v634
    %v638 = vrsqrt.pop %v630
    %v639 = vmul.f32 %v630, %v638
    %vm640 = vcmp.eq.f32.partialorder %v630, inf
    %v641 = vsel %vm640, %v630, %v639
    %vm642 = vcmp.eq.f32.partialorder %v630, 0.0
    %v643 = vand.u32 %v630, 2147483648
    %v644 = vsel %vm642, %v643, %v641
    %v645 = vadd.f32 %v637, 1e-08
    %v646 = vadd.f32 %v644, 1e-08
    %v647 = vrcp.pop %v645
    %v648 = vrcp.pop %v646
    %v649 = vmul.f32 %v527, %v647
    %v650 = vmul.f32 %v532, %v648
    %653 = vrot.lane.b32.xlu0 %v647, 32
    %v654 = vpop.permute.xlu0 %653
    %655 = vrot.lane.b32.xlu0 %v648, 32
    %v656 = vpop.permute.xlu0 %655
    %v659 = vmul.f32 %v527, %v654
    %v660 = vmul.f32 %v532, %v656
    %v661 = vmul.f32 %v607, %v649
    %v662 = vmul.f32 %v608, %v650
    %v663 = vmul.f32 %v617, %v659
    %v664 = vmul.f32 %v618, %v660
    %667 = vrot.lane.b32.xlu0 %v663, 96
    %v668 = vpop.permute.xlu0 %667
    %669 = vrot.lane.b32.xlu0 %v664, 96
    %v670 = vpop.permute.xlu0 %669
    %v673 = vsub.f32 %v661, %v668
    %v674 = vsub.f32 %v662, %v670
    %677 = vrot.lane.b32.xlu0 %v659, 96
    %v678 = vpop.permute.xlu0 %677
    %679 = vrot.lane.b32.xlu0 %v660, 96
    %v680 = vpop.permute.xlu0 %679
    %v683 = vmul.f32 %v607, %v678
    %v684 = vmul.f32 %v608, %v680
    %687 = vrot.lane.b32.xlu0 %v649, 32
    %v688 = vpop.permute.xlu0 %687
    %689 = vrot.lane.b32.xlu0 %v650, 32
    %v690 = vpop.permute.xlu0 %689
    %v693 = vmul.f32 %v617, %v688
    %v694 = vmul.f32 %v618, %v690
    %697 = vrot.lane.b32.xlu0 %v693, 96
    %v698 = vpop.permute.xlu0 %697
    %699 = vrot.lane.b32.xlu0 %v694, 96
    %v700 = vpop.permute.xlu0 %699
    %v703 = vadd.f32 %v683, %v698
    %v704 = vadd.f32 %v684, %v700
    %707 = vrot.lane.b32.xlu0 %v703, 32
    %v708 = vpop.permute.xlu0 %707
    %709 = vrot.lane.b32.xlu0 %v704, 32
    %v710 = vpop.permute.xlu0 %709
    %v713 = vsel %vm70, %v673, %v708
    %v714 = vsel %vm70, %v674, %v710
    %v715 = vld [vmem:[%s10] sm:$0xff]
    %vm716 = vcmask 64512
    %v718 = vsel %vm716, %v715, 0
    %720 = vmatprep.subr.mxu0 0.0
    %721 = vmatpush1.msra.mxu0 %v713
    %722 = vmatprep.subr.mxu0 0.0
    %723 = vmatpush1.msra.mxu0 0.0
    %724 = vmatprep.subr.mxu0 0.0
    %725 = vmatpush1.msra.mxu0 0.0
    %726 = vmatprep.subr.mxu0 0.0
    %727 = vmatpush1.msra.mxu0 0.0
    %728 = vmatprep.subr.mxu0 0.0
    %729 = vmatpush1.msra.mxu0 0.0
    %730 = vmatprep.subr.mxu0 0.0
    %731 = vmatpush1.msra.mxu0 0.0
    %732 = vmatprep.subr.mxu0 0.0
    %733 = vmatpush1.msra.mxu0 0.0
    %734 = vmatprep.subr.mxu0 0.0
    %735 = vmatpush1.msra.mxu0 0.0
    %736 = vmatprep.subr.mxu0 0.0
    %737 = vmatpush1.msra.mxu0 0.0
    %738 = vmatprep.subr.mxu0 0.0
    %739 = vmatpush1.msra.mxu0 0.0
    %740 = vmatprep.subr.mxu0 0.0
    %741 = vmatpush1.msra.mxu0 0.0
    %742 = vmatprep.subr.mxu0 0.0
    %743 = vmatpush1.msra.mxu0 0.0
    %744 = vmatprep.subr.mxu0 0.0
    %745 = vmatpush1.msra.mxu0 0.0
    %746 = vmatprep.subr.mxu0 0.0
    %747 = vmatpush1.msra.mxu0 0.0
    %748 = vmatprep.subr.mxu0 0.0
    %749 = vmatpush1.msra.mxu0 0.0
    %750 = vmatprep.subr.mxu0 0.0
    %751 = vmatpush1.msra.mxu0 0.0
    %752 = vmatprep.subr.mxu0 0.0
    %753 = vmatpush1.msra.mxu0 0.0
    %754 = vmatprep.subr.mxu0 0.0
    %755 = vmatpush1.msra.mxu0 0.0
    %756 = vmatprep.subr.mxu0 0.0
    %757 = vmatpush1.msra.mxu0 0.0
    %758 = vmatprep.subr.mxu0 0.0
    %759 = vmatpush1.msra.mxu0 0.0
    %760 = vmatprep.subr.mxu0 0.0
    %761 = vmatpush1.msra.mxu0 0.0
    %762 = vmatprep.subr.mxu0 0.0
    %763 = vmatpush1.msra.mxu0 0.0
    %764 = vmatprep.subr.mxu0 0.0
    %765 = vmatpush1.msra.mxu0 0.0
    %766 = vmatprep.subr.mxu0 0.0
    %767 = vmatpush1.msra.mxu0 0.0
    %768 = vmatprep.subr.mxu0 0.0
    %769 = vmatpush1.msra.mxu0 0.0
    %770 = vmatprep.subr.mxu0 0.0
    %771 = vmatpush1.msra.mxu0 0.0
    %772 = vmatprep.subr.mxu0 0.0
    %773 = vmatpush1.msra.mxu0 0.0
    %774 = vmatprep.subr.mxu0 0.0
    %775 = vmatpush1.msra.mxu0 0.0
    %776 = vmatprep.subr.mxu0 0.0
    %777 = vmatpush1.msra.mxu0 0.0
    %778 = vmatprep.subr.mxu0 0.0
    %779 = vmatpush1.msra.mxu0 0.0
    %780 = vmatprep.subr.mxu0 0.0
    %781 = vmatpush1.msra.mxu0 0.0
    %782 = vmatprep.subr.mxu0 0.0
    %783 = vmatpush1.msra.mxu0 0.0
    %784 = vmatprep.mubr.f32.mxu0 0.0
    %785 = vmatmul.mubr.f32.gmra.mrb[0].mxu0 %v718
    %v786 = vpop.f32.mrb[0].mxu0
    %v787 = vadd.f32 0.0, %v786
    %v788 = vpop.f32.mrb[0].mxu0
    %789 = vdwg.mxu0
    %790 = vmatprep.subr.mxu0 0.0
    %791 = vmatpush1.msra.mxu0 %v714
    %792 = vmatprep.subr.mxu0 0.0
    %793 = vmatpush1.msra.mxu0 0.0
    %794 = vmatprep.subr.mxu0 0.0
    %795 = vmatpush1.msra.mxu0 0.0
    %796 = vmatprep.subr.mxu0 0.0
    %797 = vmatpush1.msra.mxu0 0.0
    %798 = vmatprep.subr.mxu0 0.0
    %799 = vmatpush1.msra.mxu0 0.0
    %800 = vmatprep.subr.mxu0 0.0
    %801 = vmatpush1.msra.mxu0 0.0
    %802 = vmatprep.subr.mxu0 0.0
    %803 = vmatpush1.msra.mxu0 0.0
    %804 = vmatprep.subr.mxu0 0.0
    %805 = vmatpush1.msra.mxu0 0.0
    %806 = vmatprep.subr.mxu0 0.0
    %807 = vmatpush1.msra.mxu0 0.0
    %808 = vmatprep.subr.mxu0 0.0
    %809 = vmatpush1.msra.mxu0 0.0
    %810 = vmatprep.subr.mxu0 0.0
    %811 = vmatpush1.msra.mxu0 0.0
    %812 = vmatprep.subr.mxu0 0.0
    %813 = vmatpush1.msra.mxu0 0.0
    %814 = vmatprep.subr.mxu0 0.0
    %815 = vmatpush1.msra.mxu0 0.0
    %816 = vmatprep.subr.mxu0 0.0
    %817 = vmatpush1.msra.mxu0 0.0
    %818 = vmatprep.subr.mxu0 0.0
    %819 = vmatpush1.msra.mxu0 0.0
    %820 = vmatprep.subr.mxu0 0.0
    %821 = vmatpush1.msra.mxu0 0.0
    %822 = vmatprep.subr.mxu0 0.0
    %823 = vmatpush1.msra.mxu0 0.0
    %824 = vmatprep.subr.mxu0 0.0
    %825 = vmatpush1.msra.mxu0 0.0
    %826 = vmatprep.subr.mxu0 0.0
    %827 = vmatpush1.msra.mxu0 0.0
    %828 = vmatprep.subr.mxu0 0.0
    %829 = vmatpush1.msra.mxu0 0.0
    %830 = vmatprep.subr.mxu0 0.0
    %831 = vmatpush1.msra.mxu0 0.0
    %832 = vmatprep.subr.mxu0 0.0
    %833 = vmatpush1.msra.mxu0 0.0
    %834 = vmatprep.subr.mxu0 0.0
    %835 = vmatpush1.msra.mxu0 0.0
    %836 = vmatprep.subr.mxu0 0.0
    %837 = vmatpush1.msra.mxu0 0.0
    %838 = vmatprep.subr.mxu0 0.0
    %839 = vmatpush1.msra.mxu0 0.0
    %840 = vmatprep.subr.mxu0 0.0
    %841 = vmatpush1.msra.mxu0 0.0
    %842 = vmatprep.subr.mxu0 0.0
    %843 = vmatpush1.msra.mxu0 0.0
    %844 = vmatprep.subr.mxu0 0.0
    %845 = vmatpush1.msra.mxu0 0.0
    %846 = vmatprep.subr.mxu0 0.0
    %847 = vmatpush1.msra.mxu0 0.0
    %848 = vmatprep.subr.mxu0 0.0
    %849 = vmatpush1.msra.mxu0 0.0
    %850 = vmatprep.subr.mxu0 0.0
    %851 = vmatpush1.msra.mxu0 0.0
    %852 = vmatprep.subr.mxu0 0.0
    %853 = vmatpush1.msra.mxu0 0.0
    %854 = vmatprep.mubr.f32.mxu0 0.0
    %855 = vmatmul.mubr.f32.gmra.mrb[0].mxu0 %v718
    %v856 = vpop.f32.mrb[0].mxu0
    %v857 = vadd.f32 0.0, %v856
    %v858 = vpop.f32.mrb[0].mxu0
    %859 = vdwg.mxu0
    %v860 = vmul.f32 %v787, %v565
    %v861 = vmul.f32 %v857, %v566
    %v862 = vmul.f32 %v787, %v575
    %v863 = vmul.f32 %v857, %v576
    %866 = vrot.lane.b32.xlu0 %v862, 96
    %v867 = vpop.permute.xlu0 %866
    %868 = vrot.lane.b32.xlu0 %v863, 96
    %v869 = vpop.permute.xlu0 %868
    %v872 = vadd.f32 %v860, %v867
    %v873 = vadd.f32 %v861, %v869
    %876 = vrot.lane.b32.xlu0 %v565, 32
    %v877 = vpop.permute.xlu0 %876
    %878 = vrot.lane.b32.xlu0 %v566, 32
    %v879 = vpop.permute.xlu0 %878
    %v882 = vmul.f32 %v787, %v877
    %v883 = vmul.f32 %v857, %v879
    %886 = vrot.lane.b32.xlu0 %v575, 96
    %v887 = vpop.permute.xlu0 %886
    %888 = vrot.lane.b32.xlu0 %v576, 96
    %v889 = vpop.permute.xlu0 %888
    %v892 = vmul.f32 %v787, %v887
    %v893 = vmul.f32 %v857, %v889
    %896 = vrot.lane.b32.xlu0 %v892, 32
    %v897 = vpop.permute.xlu0 %896
    %898 = vrot.lane.b32.xlu0 %v893, 32
    %v899 = vpop.permute.xlu0 %898
    %v902 = vsub.f32 %v882, %v897
    %v903 = vsub.f32 %v883, %v899
    %v904 = vsel %vm70, %v872, %v902
    %v905 = vsel %vm70, %v873, %v903
    %v906 = vld [vmem:[%s9] sm:$0xff]
    %v907 = vld [vmem:[%s9 + $0x8] sm:$0xff]
    %v908 = vld [vmem:[%s9 + $0x10] sm:$0xff]
    %v909 = vld [vmem:[%s9 + $0x18] sm:$0xff]
    %v910 = vld [vmem:[%s9 + $0x20] sm:$0xff]
    %v911 = vld [vmem:[%s9 + $0x28] sm:$0xff]
    %v912 = vld [vmem:[%s9 + $0x30] sm:$0xff]
    %v913 = vld [vmem:[%s9 + $0x38] sm:$0xff]
    %vm914 = vcmask 523264
    %v916 = vsel %vm914, %v904, 0
    %v919 = vsel %vm914, %v905, 0
    %921 = vmatprep.subr.mxu0 0.0
    %922 = vmatpush1.msra.mxu0 %v906
    %923 = vmatprep.subr.mxu0 0.0
    %924 = vmatpush1.msra.mxu0 %v907
    %925 = vmatprep.subr.mxu0 0.0
    %926 = vmatpush1.msra.mxu0 %v908
    %927 = vmatprep.subr.mxu0 0.0
    %928 = vmatpush1.msra.mxu0 %v909
    %929 = vmatprep.subr.mxu0 0.0
    %930 = vmatpush1.msra.mxu0 %v910
    %931 = vmatprep.subr.mxu0 0.0
    %932 = vmatpush1.msra.mxu0 %v911
    %933 = vmatprep.subr.mxu0 0.0
    %934 = vmatpush1.msra.mxu0 %v912
    %935 = vmatprep.subr.mxu0 0.0
    %936 = vmatpush1.msra.mxu0 %v913
    %937 = vmatprep.subr.mxu0 0.0
    %938 = vmatpush1.msra.mxu0 0.0
    %939 = vmatprep.subr.mxu0 0.0
    %940 = vmatpush1.msra.mxu0 0.0
    %941 = vmatprep.subr.mxu0 0.0
    %942 = vmatpush1.msra.mxu0 0.0
    %943 = vmatprep.subr.mxu0 0.0
    %944 = vmatpush1.msra.mxu0 0.0
    %945 = vmatprep.subr.mxu0 0.0
    %946 = vmatpush1.msra.mxu0 0.0
    %947 = vmatprep.subr.mxu0 0.0
    %948 = vmatpush1.msra.mxu0 0.0
    %949 = vmatprep.subr.mxu0 0.0
    %950 = vmatpush1.msra.mxu0 0.0
    %951 = vmatprep.subr.mxu0 0.0
    %952 = vmatpush1.msra.mxu0 0.0
    %953 = vmatprep.subr.mxu0 0.0
    %954 = vmatpush1.msra.mxu0 0.0
    %955 = vmatprep.subr.mxu0 0.0
    %956 = vmatpush1.msra.mxu0 0.0
    %957 = vmatprep.subr.mxu0 0.0
    %958 = vmatpush1.msra.mxu0 0.0
    %959 = vmatprep.subr.mxu0 0.0
    %960 = vmatpush1.msra.mxu0 0.0
    %961 = vmatprep.subr.mxu0 0.0
    %962 = vmatpush1.msra.mxu0 0.0
    %963 = vmatprep.subr.mxu0 0.0
    %964 = vmatpush1.msra.mxu0 0.0
    %965 = vmatprep.subr.mxu0 0.0
    %966 = vmatpush1.msra.mxu0 0.0
    %967 = vmatprep.subr.mxu0 0.0
    %968 = vmatpush1.msra.mxu0 0.0
    %969 = vmatprep.subr.mxu0 0.0
    %970 = vmatpush1.msra.mxu0 0.0
    %971 = vmatprep.subr.mxu0 0.0
    %972 = vmatpush1.msra.mxu0 0.0
    %973 = vmatprep.subr.mxu0 0.0
    %974 = vmatpush1.msra.mxu0 0.0
    %975 = vmatprep.subr.mxu0 0.0
    %976 = vmatpush1.msra.mxu0 0.0
    %977 = vmatprep.subr.mxu0 0.0
    %978 = vmatpush1.msra.mxu0 0.0
    %979 = vmatprep.subr.mxu0 0.0
    %980 = vmatpush1.msra.mxu0 0.0
    %981 = vmatprep.subr.mxu0 0.0
    %982 = vmatpush1.msra.mxu0 0.0
    %983 = vmatprep.subr.mxu0 0.0
    %984 = vmatpush1.msra.mxu0 0.0
    %985 = vmatprep.mubr.f32.mxu0 0.0
    %986 = vmatmul.mubr.f32.gmra.mrb[0].mxu0 %v916
    %v987 = vpop.f32.mrb[0].mxu0
    %v988 = vadd.f32 0.0, %v987
    %v989 = vpop.f32.mrb[0].mxu0
    %990 = vmatprep.mubr.f32.mxu0 0.0
    %991 = vmatmul.mubr.f32.gmra.mrb[0].mxu0 %v919
    %v992 = vpop.f32.mrb[0].mxu0
    %v993 = vadd.f32 0.0, %v992
    %v994 = vpop.f32.mrb[0].mxu0
    %995 = vdwg.mxu0
    %v996 = vadd.f32 %v39, %v988
    %v997 = vadd.f32 %v40, %v993
    %v1000 = vrot.slane %v997, 7
    %vm1001 = vcmask 1041409
    %v1002 = vsel %vm1001, %v1000, %v996
    %v1004 = vrot.slane %v996, 1
    %v1005 = vsel %vm1001, %v997, %v1004
    %1006 = vrot.lane.b32.xlu0 %v1005, 32
    %v1007 = vpop.permute.xlu0 %1006
    %v1009 = vrot.slane %v996, 2
    %v1010 = vrot.slane %v997, 1
    %v1011 = vsel %vm1001, %v1010, %v1009
    %1012 = vrot.lane.b32.xlu0 %v1011, 64
    %v1013 = vpop.permute.xlu0 %1012
    %v1015 = vrot.slane %v996, 3
    %v1016 = vrot.slane %v997, 2
    %v1017 = vsel %vm1001, %v1016, %v1015
    %1018 = vrot.lane.b32.xlu0 %v1017, 96
    %v1019 = vpop.permute.xlu0 %1018
    %v1021 = vrot.slane %v996, 4
    %v1022 = vrot.slane %v997, 3
    %v1023 = vsel %vm1001, %v1022, %v1021
    %v1025 = vrot.slane %v996, 5
    %v1026 = vrot.slane %v997, 4
    %v1027 = vsel %vm1001, %v1026, %v1025
    %1028 = vrot.lane.b32.xlu0 %v1027, 32
    %v1029 = vpop.permute.xlu0 %1028
    %v1031 = vrot.slane %v996, 6
    %v1032 = vrot.slane %v997, 5
    %v1033 = vsel %vm1001, %v1032, %v1031
    %1034 = vrot.lane.b32.xlu0 %v1033, 64
    %v1035 = vpop.permute.xlu0 %1034
    %v1037 = vrot.slane %v996, 7
    %v1038 = vrot.slane %v997, 6
    %v1039 = vsel %vm1001, %v1038, %v1037
    %1040 = vrot.lane.b32.xlu0 %v1039, 96
    %v1041 = vpop.permute.xlu0 %1040
    %v1043 = vsel %vm70, %v1002, %v1007
    %v1044 = vsel %vm914, %v1043, %v1013
    %vm1045 = vcmask 785408
    %v1046 = vsel %vm1045, %v1044, %v1019
    %v1047 = vsel %vm70, %v1023, %v1029
    %v1048 = vsel %vm914, %v1047, %v1035
    %v1049 = vsel %vm1045, %v1048, %v1041
    %v1052 = vcombine.low %v1046, %v1049
    %v1054 = vunpack.c.l.s4 1983009808
    %v1055 = vunpack.c.0.s8 %v1054
    %v1056 = vlaneseq
    %v1057 = vshrl.u32 %v1056, 7
    %v1058 = vsub.s32 %v1055, %v1057
    %v1059 = vrot.slane %v1052, %v1058
    %1061 = vst [vmem:[#allocation2] sm:$0xf] %v1059
    // Predicated region
    $region46: #{tpu_custom_call.1} parent=1 // pred_check
      _
    $region47: #{tpu_custom_call.1} parent=1 // pred_check_branch
      %1063 = sbr.rel (0) target = $region49
    $region48: #{tpu_custom_call.1} parent=1 // pred_region
      %s1065 = ssub.s32 64, 64
      %1066 = vsyncadd [#allocation3], %s1065
      %s1068 = sshll.u32 [#allocation2], 4
      %s1069 = int_to_ptr.vmem [resolvable:$true] %s1068
      %1071 = dma.vmem_to_hbm [thread:$0]  %s1069, 64, %s11, [#allocation3]
    $region49: #{tpu_custom_call.1} parent=1 // pred_fallthru
      _
    // Predicated region
    $region50: #{tpu_custom_call.1} parent=1 // pred_check
      _
    $region51: #{tpu_custom_call.1} parent=1 // pred_check_branch
      %1073 = sbr.rel (0) target = $region53
    $region52: #{tpu_custom_call.1} parent=1 // pred_region
      %1074 = dma.done [#allocation3], 64
    $region53: #{tpu_custom_call.1} parent=1 // pred_fallthru
      _
    %1075 = vsyncpa [#allocation3], 1

</llo_original>
